<compile_context>
chip_gen: v5e
topology: v5e:2x2
jax: 0.10.0
libtpu: 0.0.40
codegen_flags: <defaults>
</compile_context>

<pallas_src>
import jax
import jax.numpy as jnp
from jax import lax
from jax.experimental import pallas as pl
from jax.experimental.pallas import tpu as pltpu


def _make_supcon_kernel(temperature: float, margin: float, with_shared: bool):
    """Builds the fused loss kernel. temperature/margin are compile-time consts."""
    temperature = float(temperature)
    margin = float(margin)
    inv_temp = 1.0 / temperature
    margin_over_t = margin / temperature

    def kernel(lab_col_ref, lab_row_ref, tu_ref, ta_ref, *rest):
        if with_shared:
            tsh_ref, o_ref = rest
        else:
            (o_ref,) = rest

        f32 = jnp.float32
        n = tu_ref.shape[0]
        inv_n = 1.0 / n

        # Positive-pair mask from labels: (N, 1) == (1, N) -> (N, N). Computed once.
        mask = (lab_col_ref[...] == lab_row_ref[...]).astype(f32)
        msum_row = jnp.sum(mask, axis=1, keepdims=True)            # (N, 1)
        msum_col = jnp.sum(mask, axis=0, keepdims=True)            # (1, N)
        inv_msum_row = 1.0 / msum_row                               # (N, 1)
        inv_msum_col = 1.0 / msum_col                               # (1, N)

        def l2_normalize(x):
            # Matches F.normalize(p=2, dim=1): x / max(||x||_2, eps)
            nrm = jnp.sqrt(jnp.sum(x * x, axis=1, keepdims=True))
            return x / jnp.maximum(nrm, 1e-12)

        def pair_term(a_scaled, b, symmetric):
            # sim/T directly from the MXU: 1/T is pre-folded into a_scaled.
            sim = lax.dot_general(a_scaled, b, (((1,), (1,)), ((), ())),
                                  preferred_element_type=f32)
            if margin != 0.0:
                # Diagonal margin applied fused; no persistent NxN f32 matrix.
                rid = lax.broadcasted_iota(jnp.int32, (n, n), 0)
                cid = lax.broadcasted_iota(jnp.int32, (n, n), 1)
                sim = jnp.where(rid == cid, sim - margin_over_t, sim)

            # Numerically stable log-sum-exp: one global max shift, one exp pass.
            m_glob = jnp.max(jnp.max(sim, axis=1, keepdims=True),
                             axis=0, keepdims=True)                 # (1, 1)
            e = jnp.exp(sim - m_glob)                                # (N, N)

            masked_sim = sim * mask                                  # (N, N), reused

            lse_row = m_glob + jnp.log(jnp.sum(e, axis=1, keepdims=True))   # (N, 1)
            x1 = jnp.sum(masked_sim, axis=1, keepdims=True) * inv_msum_row - lse_row
            m1 = jnp.sum(x1, axis=0, keepdims=True) * inv_n          # (1, 1)

            if symmetric:
                # sim and mask symmetric -> column side equals row side.
                return -m1

            lse_col = m_glob + jnp.log(jnp.sum(e, axis=0, keepdims=True))   # (1, N)
            x2 = jnp.sum(masked_sim, axis=0, keepdims=True) * inv_msum_col - lse_col
            m2 = jnp.sum(x2, axis=1, keepdims=True) * inv_n          # (1, 1)
            return -(m1 + m2) * 0.5

        nu = l2_normalize(tu_ref[...].astype(f32))
        na = l2_normalize(ta_ref[...].astype(f32))
        nu_s = nu * inv_temp                                         # (N, E) scaled copies
        na_s = na * inv_temp

        loss = pair_term(nu_s, na, symmetric=False)                  # (u, a)
        loss = loss + pair_term(na_s, na, symmetric=True)            # (a, a)
        loss = loss + pair_term(nu_s, nu, symmetric=True)            # (u, u)
        if with_shared:
            ns = l2_normalize(tsh_ref[...].astype(f32))
            loss = loss + pair_term(ns * inv_temp, ns, symmetric=True)   # (s, s)

        # Full-ref store of the (1, 1) scalar tile.
        o_ref[...] = loss.astype(o_ref.dtype)

    return kernel


class SupConCLIPLossIntraModalPallas:
    """JAX/Pallas re-implementation of SupConCLIPLossIntraModal.forward."""

    def __init__(self, temperature: float = 1.0, margin: float = 0.0):
        self.temperature = float(temperature)
        self.margin = float(margin)

    def __call__(self, tab_unique, ts_anchor, labels, tab_shared=None):
        n, e = tab_unique.shape
        with_shared = tab_shared is not None

        labels = jnp.asarray(labels).reshape(-1).astype(jnp.int32)
        lab_col = labels.reshape(n, 1)
        lab_row = labels.reshape(1, n)

        # Inputs are NOT upcast here; the kernel casts in VMEM after DMA.
        inputs = [lab_col, lab_row, tab_unique, ts_anchor]
        in_specs = [
            pl.BlockSpec((n, 1), lambda: (0, 0)),
            pl.BlockSpec((1, n), lambda: (0, 0)),
            pl.BlockSpec((n, e), lambda: (0, 0)),
            pl.BlockSpec((n, e), lambda: (0, 0)),
        ]
        if with_shared:
            inputs.append(tab_shared)
            in_specs.append(pl.BlockSpec((n, e), lambda: (0, 0)))

        kernel = _make_supcon_kernel(self.temperature, self.margin, with_shared)

        # VMEM footprint estimate: a handful of live NxN f32 temporaries
        # (mask, sim, e, masked_sim + slack) plus the (N, E) inputs.
        nsq_bytes = 8 * 4 * n * n
        in_bytes = (3 + int(with_shared)) * n * e * 4 * 2
        vmem_limit = int(min(max(nsq_bytes + in_bytes + (4 << 20), 32 << 20),
                             100 << 20))

        out = pl.pallas_call(
            kernel,
            out_shape=jax.ShapeDtypeStruct((1, 1), jnp.float32),
            in_specs=in_specs,
            out_specs=pl.BlockSpec((1, 1), lambda: (0, 0)),
            compiler_params=pltpu.CompilerParams(vmem_limit_bytes=vmem_limit),
        )(*inputs)
        return out[0, 0]


def _reference_loss(tab_unique, ts_anchor, labels, temperature, margin,
                    tab_shared=None):
    """Plain-JAX mirror of the PyTorch forward for correctness checking."""
    n = tab_unique.shape[0]
    labels = labels.reshape(-1, 1)
    mask = (labels == labels.T).astype(jnp.float32)

    def norm(x):
        nn = jnp.sqrt(jnp.sum(x * x, axis=1, keepdims=True))
        return x / jnp.maximum(nn, 1e-12)

    nu, na = norm(tab_unique), norm(ts_anchor)
    eye = jnp.eye(n, dtype=jnp.float32)

    def term(a, b):
        sim = (a @ b.T - eye * margin) / temperature
        e = jnp.exp(sim)
        x1 = sim - jnp.log(e.sum(axis=1, keepdims=True))
        x2 = sim - jnp.log(e.sum(axis=0, keepdims=True))
        x1 = (x1 * mask).sum(axis=1) / mask.sum(axis=1)
        x2 = (x2 * mask).sum(axis=0) / mask.sum(axis=0)
        return (-x1.mean() - x2.mean()) / 2.0

    loss = term(nu, na) + term(na, na) + term(nu, nu)
    if tab_shared is not None:
        ns = norm(tab_shared)
        loss = loss + term(ns, ns)
    return loss


if __name__ == "__main__":
    key = jax.random.PRNGKey(0)
    k_u, k_a, k_s, k_l = jax.random.split(key, 4)

    # Small shapes consistent with the module: N embeddings of dim E + labels.
    N, E = 8, 32
    temperature, margin = 0.5, 0.1

    tab_unique = jax.random.normal(k_u, (N, E), dtype=jnp.float32)
    ts_anchor = jax.random.normal(k_a, (N, E), dtype=jnp.float32)
    tab_shared = jax.random.normal(k_s, (N, E), dtype=jnp.float32)
    labels = jax.random.randint(k_l, (N,), 0, 3)

    loss_fn = SupConCLIPLossIntraModalPallas(temperature=temperature, margin=margin)

    loss3 = loss_fn(tab_unique, ts_anchor, labels)                 # tab_shared=None
    loss4 = loss_fn(tab_unique, ts_anchor, labels, tab_shared)     # with tab_shared
    jax.block_until_ready((loss3, loss4))

    ref3 = _reference_loss(tab_unique, ts_anchor, labels, temperature, margin)
    ref4 = _reference_loss(tab_unique, ts_anchor, labels, temperature, margin,
                           tab_shared)

    assert loss3.shape == () and loss4.shape == ()
    assert jnp.allclose(loss3, ref3, atol=1e-4, rtol=1e-4), (loss3, ref3)
    assert jnp.allclose(loss4, ref4, atol=1e-4, rtol=1e-4), (loss4, ref4)

    print("KERNEL_OK")
</pallas_src>

<mosaic_0001>
module attributes {stable_mosaic.version = 11 : i64} {
  func.func @kernel(%arg0: memref<8x1xi32, #tpu.memory_space<vmem>>, %arg1: memref<1x8xi32, #tpu.memory_space<vmem>>, %arg2: memref<8x32xf32, #tpu.memory_space<vmem>>, %arg3: memref<8x32xf32, #tpu.memory_space<vmem>>, %arg4: memref<1x1xf32, #tpu.memory_space<vmem>>) attributes {dimension_semantics = [], scalar_prefetch = 0 : i64, scratch_operands = 0 : i64, tpu.core_type = #tpu.core_type<tc>} {
    %c0 = arith.constant 0 : index
    %c0_0 = arith.constant 0 : index
    %0 = vector.load %arg0[%c0, %c0_0] : memref<8x1xi32, #tpu.memory_space<vmem>>, vector<8x1xi32>
    %c0_1 = arith.constant 0 : index
    %c0_2 = arith.constant 0 : index
    %1 = vector.load %arg1[%c0_1, %c0_2] : memref<1x8xi32, #tpu.memory_space<vmem>>, vector<1x8xi32>
    %2 = vector.broadcast %0 : vector<8x1xi32> to vector<8x8xi32>
    %3 = vector.broadcast %1 : vector<1x8xi32> to vector<8x8xi32>
    %4 = arith.cmpi eq, %2, %3 : vector<8x8xi32>
    %5 = arith.extui %4 : vector<8x8xi1> to vector<8x8xi32>
    %6 = arith.sitofp %5 : vector<8x8xi32> to vector<8x8xf32>
    %cst = arith.constant dense<0.000000e+00> : vector<8xf32>
    %7 = vector.multi_reduction <add>, %6, %cst [1] : vector<8x8xf32> to vector<8xf32>
    %8 = vector.shape_cast %7 : vector<8xf32> to vector<8x1xf32>
    %cst_3 = arith.constant dense<0.000000e+00> : vector<8xf32>
    %9 = vector.multi_reduction <add>, %6, %cst_3 [0] : vector<8x8xf32> to vector<8xf32>
    %10 = vector.shape_cast %9 : vector<8xf32> to vector<1x8xf32>
    %cst_4 = arith.constant 1.000000e+00 : f32
    %11 = vector.broadcast %cst_4 : f32 to vector<8x1xf32>
    %12 = arith.divf %11, %8 : vector<8x1xf32>
    %cst_5 = arith.constant 1.000000e+00 : f32
    %13 = vector.broadcast %cst_5 : f32 to vector<1x8xf32>
    %14 = arith.divf %13, %10 : vector<1x8xf32>
    %c0_6 = arith.constant 0 : index
    %c0_7 = arith.constant 0 : index
    %15 = vector.load %arg2[%c0_6, %c0_7] : memref<8x32xf32, #tpu.memory_space<vmem>>, vector<8x32xf32>
    %16 = arith.mulf %15, %15 : vector<8x32xf32>
    %cst_8 = arith.constant dense<0.000000e+00> : vector<8xf32>
    %17 = vector.multi_reduction <add>, %16, %cst_8 [1] : vector<8x32xf32> to vector<8xf32>
    %18 = vector.shape_cast %17 : vector<8xf32> to vector<8x1xf32>
    %19 = math.sqrt %18 : vector<8x1xf32>
    %cst_9 = arith.constant 9.99999996E-13 : f32
    %20 = vector.broadcast %cst_9 : f32 to vector<8x1xf32>
    %21 = arith.maximumf %19, %20 : vector<8x1xf32>
    %22 = vector.broadcast %21 : vector<8x1xf32> to vector<8x32xf32>
    %23 = arith.divf %15, %22 : vector<8x32xf32>
    %c0_10 = arith.constant 0 : index
    %c0_11 = arith.constant 0 : index
    %24 = vector.load %arg3[%c0_10, %c0_11] : memref<8x32xf32, #tpu.memory_space<vmem>>, vector<8x32xf32>
    %25 = arith.mulf %24, %24 : vector<8x32xf32>
    %cst_12 = arith.constant dense<0.000000e+00> : vector<8xf32>
    %26 = vector.multi_reduction <add>, %25, %cst_12 [1] : vector<8x32xf32> to vector<8xf32>
    %27 = vector.shape_cast %26 : vector<8xf32> to vector<8x1xf32>
    %28 = math.sqrt %27 : vector<8x1xf32>
    %cst_13 = arith.constant 9.99999996E-13 : f32
    %29 = vector.broadcast %cst_13 : f32 to vector<8x1xf32>
    %30 = arith.maximumf %28, %29 : vector<8x1xf32>
    %31 = vector.broadcast %30 : vector<8x1xf32> to vector<8x32xf32>
    %32 = arith.divf %24, %31 : vector<8x32xf32>
    %cst_14 = arith.constant 2.000000e+00 : f32
    %33 = vector.broadcast %cst_14 : f32 to vector<8x32xf32>
    %34 = arith.mulf %23, %33 : vector<8x32xf32>
    %cst_15 = arith.constant 2.000000e+00 : f32
    %35 = vector.broadcast %cst_15 : f32 to vector<8x32xf32>
    %36 = arith.mulf %32, %35 : vector<8x32xf32>
    %cst_16 = arith.constant dense<0.000000e+00> : vector<8x8xf32>
    %37 = tpu.matmul %34, %32, %cst_16 {dimension_numbers = #tpu.dot_dimension_numbers<[1], [1], [0], [0], [0, 0, 1, 0], [], []>} : vector<8x32xf32>, vector<8x32xf32>, vector<8x8xf32> -> vector<8x8xf32>
    %38 = tpu.iota {dimensions = array<i32: 0>} : vector<8x8xi32>
    %39 = tpu.iota {dimensions = array<i32: 1>} : vector<8x8xi32>
    %40 = arith.cmpi eq, %38, %39 : vector<8x8xi32>
    %cst_17 = arith.constant 2.000000e-01 : f32
    %41 = vector.broadcast %cst_17 : f32 to vector<8x8xf32>
    %42 = arith.subf %37, %41 : vector<8x8xf32>
    %43 = arith.select %40, %42, %37 : vector<8x8xi1>, vector<8x8xf32>
    %cst_18 = arith.constant dense<0xFF800000> : vector<8xf32>
    %44 = vector.multi_reduction <maximumf>, %43, %cst_18 [1] : vector<8x8xf32> to vector<8xf32>
    %45 = vector.shape_cast %44 : vector<8xf32> to vector<8x1xf32>
    %cst_19 = arith.constant dense<0xFF800000> : vector<1xf32>
    %46 = vector.multi_reduction <maximumf>, %45, %cst_19 [0] : vector<8x1xf32> to vector<1xf32>
    %47 = vector.shape_cast %46 : vector<1xf32> to vector<1x1xf32>
    %48 = vector.broadcast %47 : vector<1x1xf32> to vector<8x8xf32>
    %49 = arith.subf %43, %48 : vector<8x8xf32>
    %50 = math.exp %49 : vector<8x8xf32>
    %51 = arith.mulf %43, %6 : vector<8x8xf32>
    %cst_20 = arith.constant dense<0.000000e+00> : vector<8xf32>
    %52 = vector.multi_reduction <add>, %50, %cst_20 [1] : vector<8x8xf32> to vector<8xf32>
    %53 = vector.shape_cast %52 : vector<8xf32> to vector<8x1xf32>
    %54 = math.log %53 : vector<8x1xf32>
    %55 = vector.broadcast %47 : vector<1x1xf32> to vector<8x1xf32>
    %56 = arith.addf %55, %54 : vector<8x1xf32>
    %cst_21 = arith.constant dense<0.000000e+00> : vector<8xf32>
    %57 = vector.multi_reduction <add>, %51, %cst_21 [1] : vector<8x8xf32> to vector<8xf32>
    %58 = vector.shape_cast %57 : vector<8xf32> to vector<8x1xf32>
    %59 = arith.mulf %58, %12 : vector<8x1xf32>
    %60 = arith.subf %59, %56 : vector<8x1xf32>
    %cst_22 = arith.constant dense<0.000000e+00> : vector<1xf32>
    %61 = vector.multi_reduction <add>, %60, %cst_22 [0] : vector<8x1xf32> to vector<1xf32>
    %62 = vector.shape_cast %61 : vector<1xf32> to vector<1x1xf32>
    %cst_23 = arith.constant 1.250000e-01 : f32
    %63 = vector.broadcast %cst_23 : f32 to vector<1x1xf32>
    %64 = arith.mulf %62, %63 : vector<1x1xf32>
    %cst_24 = arith.constant dense<0.000000e+00> : vector<8xf32>
    %65 = vector.multi_reduction <add>, %50, %cst_24 [0] : vector<8x8xf32> to vector<8xf32>
    %66 = vector.shape_cast %65 : vector<8xf32> to vector<1x8xf32>
    %67 = math.log %66 : vector<1x8xf32>
    %68 = vector.broadcast %47 : vector<1x1xf32> to vector<1x8xf32>
    %69 = arith.addf %68, %67 : vector<1x8xf32>
    %cst_25 = arith.constant dense<0.000000e+00> : vector<8xf32>
    %70 = vector.multi_reduction <add>, %51, %cst_25 [0] : vector<8x8xf32> to vector<8xf32>
    %71 = vector.shape_cast %70 : vector<8xf32> to vector<1x8xf32>
    %72 = arith.mulf %71, %14 : vector<1x8xf32>
    %73 = arith.subf %72, %69 : vector<1x8xf32>
    %cst_26 = arith.constant dense<0.000000e+00> : vector<1xf32>
    %74 = vector.multi_reduction <add>, %73, %cst_26 [1] : vector<1x8xf32> to vector<1xf32>
    %75 = vector.shape_cast %74 : vector<1xf32> to vector<1x1xf32>
    %cst_27 = arith.constant 1.250000e-01 : f32
    %76 = vector.broadcast %cst_27 : f32 to vector<1x1xf32>
    %77 = arith.mulf %75, %76 : vector<1x1xf32>
    %78 = arith.addf %64, %77 : vector<1x1xf32>
    %cst_28 = arith.constant 0.000000e+00 : f32
    %79 = vector.broadcast %cst_28 : f32 to vector<1x1xf32>
    %80 = arith.subf %79, %78 : vector<1x1xf32>
    %cst_29 = arith.constant 5.000000e-01 : f32
    %81 = vector.broadcast %cst_29 : f32 to vector<1x1xf32>
    %82 = arith.mulf %80, %81 : vector<1x1xf32>
    %cst_30 = arith.constant dense<0.000000e+00> : vector<8x8xf32>
    %83 = tpu.matmul %36, %32, %cst_30 {dimension_numbers = #tpu.dot_dimension_numbers<[1], [1], [0], [0], [0, 0, 1, 0], [], []>} : vector<8x32xf32>, vector<8x32xf32>, vector<8x8xf32> -> vector<8x8xf32>
    %84 = tpu.iota {dimensions = array<i32: 0>} : vector<8x8xi32>
    %85 = tpu.iota {dimensions = array<i32: 1>} : vector<8x8xi32>
    %86 = arith.cmpi eq, %84, %85 : vector<8x8xi32>
    %cst_31 = arith.constant 2.000000e-01 : f32
    %87 = vector.broadcast %cst_31 : f32 to vector<8x8xf32>
    %88 = arith.subf %83, %87 : vector<8x8xf32>
    %89 = arith.select %86, %88, %83 : vector<8x8xi1>, vector<8x8xf32>
    %cst_32 = arith.constant dense<0xFF800000> : vector<8xf32>
    %90 = vector.multi_reduction <maximumf>, %89, %cst_32 [1] : vector<8x8xf32> to vector<8xf32>
    %91 = vector.shape_cast %90 : vector<8xf32> to vector<8x1xf32>
    %cst_33 = arith.constant dense<0xFF800000> : vector<1xf32>
    %92 = vector.multi_reduction <maximumf>, %91, %cst_33 [0] : vector<8x1xf32> to vector<1xf32>
    %93 = vector.shape_cast %92 : vector<1xf32> to vector<1x1xf32>
    %94 = vector.broadcast %93 : vector<1x1xf32> to vector<8x8xf32>
    %95 = arith.subf %89, %94 : vector<8x8xf32>
    %96 = math.exp %95 : vector<8x8xf32>
    %97 = arith.mulf %89, %6 : vector<8x8xf32>
    %cst_34 = arith.constant dense<0.000000e+00> : vector<8xf32>
    %98 = vector.multi_reduction <add>, %96, %cst_34 [1] : vector<8x8xf32> to vector<8xf32>
    %99 = vector.shape_cast %98 : vector<8xf32> to vector<8x1xf32>
    %100 = math.log %99 : vector<8x1xf32>
    %101 = vector.broadcast %93 : vector<1x1xf32> to vector<8x1xf32>
    %102 = arith.addf %101, %100 : vector<8x1xf32>
    %cst_35 = arith.constant dense<0.000000e+00> : vector<8xf32>
    %103 = vector.multi_reduction <add>, %97, %cst_35 [1] : vector<8x8xf32> to vector<8xf32>
    %104 = vector.shape_cast %103 : vector<8xf32> to vector<8x1xf32>
    %105 = arith.mulf %104, %12 : vector<8x1xf32>
    %106 = arith.subf %105, %102 : vector<8x1xf32>
    %cst_36 = arith.constant dense<0.000000e+00> : vector<1xf32>
    %107 = vector.multi_reduction <add>, %106, %cst_36 [0] : vector<8x1xf32> to vector<1xf32>
    %108 = vector.shape_cast %107 : vector<1xf32> to vector<1x1xf32>
    %cst_37 = arith.constant 1.250000e-01 : f32
    %109 = vector.broadcast %cst_37 : f32 to vector<1x1xf32>
    %110 = arith.mulf %108, %109 : vector<1x1xf32>
    %cst_38 = arith.constant 0.000000e+00 : f32
    %111 = vector.broadcast %cst_38 : f32 to vector<1x1xf32>
    %112 = arith.subf %111, %110 : vector<1x1xf32>
    %113 = arith.addf %82, %112 : vector<1x1xf32>
    %cst_39 = arith.constant dense<0.000000e+00> : vector<8x8xf32>
    %114 = tpu.matmul %34, %23, %cst_39 {dimension_numbers = #tpu.dot_dimension_numbers<[1], [1], [0], [0], [0, 0, 1, 0], [], []>} : vector<8x32xf32>, vector<8x32xf32>, vector<8x8xf32> -> vector<8x8xf32>
    %115 = tpu.iota {dimensions = array<i32: 0>} : vector<8x8xi32>
    %116 = tpu.iota {dimensions = array<i32: 1>} : vector<8x8xi32>
    %117 = arith.cmpi eq, %115, %116 : vector<8x8xi32>
    %cst_40 = arith.constant 2.000000e-01 : f32
    %118 = vector.broadcast %cst_40 : f32 to vector<8x8xf32>
    %119 = arith.subf %114, %118 : vector<8x8xf32>
    %120 = arith.select %117, %119, %114 : vector<8x8xi1>, vector<8x8xf32>
    %cst_41 = arith.constant dense<0xFF800000> : vector<8xf32>
    %121 = vector.multi_reduction <maximumf>, %120, %cst_41 [1] : vector<8x8xf32> to vector<8xf32>
    %122 = vector.shape_cast %121 : vector<8xf32> to vector<8x1xf32>
    %cst_42 = arith.constant dense<0xFF800000> : vector<1xf32>
    %123 = vector.multi_reduction <maximumf>, %122, %cst_42 [0] : vector<8x1xf32> to vector<1xf32>
    %124 = vector.shape_cast %123 : vector<1xf32> to vector<1x1xf32>
    %125 = vector.broadcast %124 : vector<1x1xf32> to vector<8x8xf32>
    %126 = arith.subf %120, %125 : vector<8x8xf32>
    %127 = math.exp %126 : vector<8x8xf32>
    %128 = arith.mulf %120, %6 : vector<8x8xf32>
    %cst_43 = arith.constant dense<0.000000e+00> : vector<8xf32>
    %129 = vector.multi_reduction <add>, %127, %cst_43 [1] : vector<8x8xf32> to vector<8xf32>
    %130 = vector.shape_cast %129 : vector<8xf32> to vector<8x1xf32>
    %131 = math.log %130 : vector<8x1xf32>
    %132 = vector.broadcast %124 : vector<1x1xf32> to vector<8x1xf32>
    %133 = arith.addf %132, %131 : vector<8x1xf32>
    %cst_44 = arith.constant dense<0.000000e+00> : vector<8xf32>
    %134 = vector.multi_reduction <add>, %128, %cst_44 [1] : vector<8x8xf32> to vector<8xf32>
    %135 = vector.shape_cast %134 : vector<8xf32> to vector<8x1xf32>
    %136 = arith.mulf %135, %12 : vector<8x1xf32>
    %137 = arith.subf %136, %133 : vector<8x1xf32>
    %cst_45 = arith.constant dense<0.000000e+00> : vector<1xf32>
    %138 = vector.multi_reduction <add>, %137, %cst_45 [0] : vector<8x1xf32> to vector<1xf32>
    %139 = vector.shape_cast %138 : vector<1xf32> to vector<1x1xf32>
    %cst_46 = arith.constant 1.250000e-01 : f32
    %140 = vector.broadcast %cst_46 : f32 to vector<1x1xf32>
    %141 = arith.mulf %139, %140 : vector<1x1xf32>
    %cst_47 = arith.constant 0.000000e+00 : f32
    %142 = vector.broadcast %cst_47 : f32 to vector<1x1xf32>
    %143 = arith.subf %142, %141 : vector<1x1xf32>
    %144 = arith.addf %113, %143 : vector<1x1xf32>
    %c0_48 = arith.constant 0 : index
    %c0_49 = arith.constant 0 : index
    %145 = vector.load %arg4[%c0_48, %c0_49] : memref<1x1xf32, #tpu.memory_space<vmem>>, vector<1x1xf32>
    tpu.vector_store %arg4[%c0_48, %c0_49], %144 {strides = array<i32>} : memref<1x1xf32, #tpu.memory_space<vmem>>, vector<1x1xf32>,
    return
  }
}

</mosaic_0001>

<llo_original>
// kernel: tpu_custom_call.1
$region0: #{tpu_custom_call.1}
  #allocation0 [shape = 'u32[]', space=smem, size = 0x4, offset = 0x4, fixed_abs, tag = 'smem constant byte address 0x4 - core index']
  #allocation1 [shape = 'u32[72,128]{1,0:T(1,128)}', space=vmem, size = 0x9000, scoped, tag = 'internal scratch']
  %s0 = inlined_call_operand.vmem [shape: s32[8,1], index: 0, kind: input, shape index: {}]
  %s1 = inlined_call_operand.vmem [shape: s32[1,8], index: 1, kind: input, shape index: {}]
  %s2 = inlined_call_operand.vmem [shape: f32[8,32], index: 2, kind: input, shape index: {}]
  %s3 = inlined_call_operand.hbm [shape: f32[8,32], index: 3, kind: input, shape index: {}]
  %s4 = inlined_call_operand.hbm [shape: f32[1,1], index: 4, kind: output, shape index: {}]
  %s5 = sld [smem:[#allocation0]]
  $region30: #{tpu_custom_call.1} parent=0
    _
  %s7 = ssub.s32 1, %s5
  %s8 = scalar_select 0, %s7, %s5
  $region1: #{tpu_custom_call.1} parent=0
    #allocation2 [shape = 'u8[4096]{0}', space=vmem, size = 0x1000, scoped, tag = 'input window, operand 3, single buffered']
    #allocation3 [shape = 's32[1]{0}', space=sflag, size = 0x4, scoped, tag = 'scoped memory for tpu_custom_call.1']
    #allocation4 [shape = 's32[1]{0}', space=sflag, size = 0x4, scoped, tag = 'scoped memory for tpu_custom_call.1']
    #allocation5 [shape = 'u8[512]{0}', space=vmem, size = 0x400, scoped, tag = 'output window, operand 0, single buffered']
    %9 = vsyncpa [#allocation3], 0
    %10 = vsyncpa [#allocation4], 0
    // Predicated region
    $region2: #{tpu_custom_call.1} parent=1 // pred_check
      _
    $region3: #{tpu_custom_call.1} parent=1 // pred_check_branch
      %12 = sbr.rel (0) target = $region5
    $region4: #{tpu_custom_call.1} parent=1 // pred_region
      _
    $region5: #{tpu_custom_call.1} parent=1 // pred_fallthru
      _
    // Predicated region
    $region6: #{tpu_custom_call.1} parent=1 // pred_check
      _
    $region7: #{tpu_custom_call.1} parent=1 // pred_check_branch
      %14 = sbr.rel (0) target = $region9
    $region8: #{tpu_custom_call.1} parent=1 // pred_region
      _
    $region9: #{tpu_custom_call.1} parent=1 // pred_fallthru
      _
    // Predicated region
    $region10: #{tpu_custom_call.1} parent=1 // pred_check
      _
    $region11: #{tpu_custom_call.1} parent=1 // pred_check_branch
      %16 = sbr.rel (0) target = $region13
    $region12: #{tpu_custom_call.1} parent=1 // pred_region
      _
    $region13: #{tpu_custom_call.1} parent=1 // pred_fallthru
      _
    // Predicated region
    $region14: #{tpu_custom_call.1} parent=1 // pred_check
      _
    $region15: #{tpu_custom_call.1} parent=1 // pred_check_branch
      %18 = sbr.rel (0) target = $region17
    $region16: #{tpu_custom_call.1} parent=1 // pred_region
      %20 = vsyncadd [#allocation3], 0
      %s22 = sshll.u32 %s3, 4
      %s23 = int_to_ptr.hbm [resolvable:$true] %s22
      %s24 = sshll.u32 [#allocation2], 4
      %s25 = int_to_ptr.vmem [resolvable:$true] %s24
      %27 = dma.hbm_to_vmem [thread:$0]  %s23, 128, %s25, [#allocation3]
    $region17: #{tpu_custom_call.1} parent=1 // pred_fallthru
      _
    // Predicated region
    $region18: #{tpu_custom_call.1} parent=1 // pred_check
      _
    $region19: #{tpu_custom_call.1} parent=1 // pred_check_branch
      %29 = sbr.rel (0) target = $region21
    $region20: #{tpu_custom_call.1} parent=1 // pred_region
      %31 = dma.done [#allocation3], 128
    $region21: #{tpu_custom_call.1} parent=1 // pred_fallthru
      _
    %v32 = vld [vmem:[%s0] sm:$0xff]
    %v33 = vld [vmem:[%s1] sm:$0x1]
    %34 = vset.pattern.permute.xlu0 0
    %35 = vperm.xlu0 %34, %v32
    %v36 = vpop.permute.xlu0 %35
    %v37 = vperm.slane %v33, 0
    %vm38 = vcmp.eq.s32.totalorder %v36, %v37
    %v39 = vsel %vm38, 1, 0
    %v40 = vcvt.s32.f32 %v39
    %vm41 = vcmask 64512
    %v42 = vsel %vm41, %v40, 0.0
    %43 = vadd.xlane.f32.xlu0 %v42
    %v44 = vpop.xlane.xlu0 %43
    %v45 = vrot.slane %v42, 4
    %v46 = vadd.f32 %v42, %v45
    %v47 = vrot.slane %v46, 2
    %v48 = vadd.f32 %v46, %v47
    %v49 = vrot.slane %v48, 1
    %v50 = vadd.f32 %v48, %v49
    %v51 = vrcp.pop %v44
    %v52 = vmul.f32 %v44, %v51
    %v53 = vsub.f32 1.0, %v52
    %v54 = vmul.f32 %v51, %v53
    %v55 = vadd.f32 %v51, %v54
    %vm56 = vweird.f32 %v44
    %vm57 = vweird.f32 %v51
    %vm58 = vmor %vm56, %vm57
    %v59 = vsel %vm58, %v51, %v55
    %v60 = vand.u32 2147483647, %v44
    %vm61 = vcmp.eq.f32.partialorder %v60, 8.507059e+37
    %v62 = vand.u32 %v44, 2147483648
    %v63 = vor.u32 1.1754944e-38, %v62
    %v64 = vsel %vm61, %v63, %v59
    %v65 = vmul.f32 1.0, %v64
    %v66 = vrcp.pop %v50
    %v67 = vmul.f32 %v50, %v66
    %v68 = vsub.f32 1.0, %v67
    %v69 = vmul.f32 %v66, %v68
    %v70 = vadd.f32 %v66, %v69
    %vm71 = vweird.f32 %v50
    %vm72 = vweird.f32 %v66
    %vm73 = vmor %vm71, %vm72
    %v74 = vsel %vm73, %v66, %v70
    %v75 = vand.u32 2147483647, %v50
    %vm76 = vcmp.eq.f32.partialorder %v75, 8.507059e+37
    %v77 = vand.u32 %v50, 2147483648
    %v78 = vor.u32 1.1754944e-38, %v77
    %v79 = vsel %vm76, %v78, %v74
    %v80 = vmul.f32 1.0, %v79
    %v81 = vld [vmem:[%s2] sm:$0xff]
    %v82 = vmul.f32 %v81, %v81
    %vm83 = vcmask 261120
    %v84 = vsel %vm83, %v82, 0.0
    %85 = vadd.xlane.f32.xlu0 %v84
    %v86 = vpop.xlane.xlu0 %85
    %v87 = vrsqrt.pop %v86
    %v88 = vmul.f32 %v87, %v86
    %v89 = vmul.f32 %v88, %v87
    %v90 = vmul.f32 0.5, %v89
    %v91 = vsub.f32 1.5, %v90
    %v92 = vmul.f32 %v87, %v91
    %v93 = vmul.f32 %v86, %v92
    %vm94 = vcmp.eq.f32.partialorder %v86, inf
    %v95 = vsel %vm94, %v86, %v93
    %vm96 = vcmp.eq.f32.partialorder %v86, 0.0
    %v97 = vand.u32 %v86, 2147483648
    %v98 = vsel %vm96, %v97, %v95
    %v99 = vmax.f32 %v98, 1e-12
    %v100 = vrcp.pop %v99
    %v101 = vmul.f32 %v99, %v100
    %v102 = vsub.f32 1.0, %v101
    %v103 = vmul.f32 %v100, %v102
    %v104 = vadd.f32 %v100, %v103
    %vm105 = vweird.f32 %v99
    %vm106 = vweird.f32 %v100
    %vm107 = vmor %vm105, %vm106
    %v108 = vsel %vm107, %v100, %v104
    %v109 = vand.u32 2147483647, %v99
    %vm110 = vcmp.eq.f32.partialorder %v109, 8.507059e+37
    %v111 = vand.u32 %v99, 2147483648
    %v112 = vor.u32 1.1754944e-38, %v111
    %v113 = vsel %vm110, %v112, %v108
    %v114 = vmul.f32 %v81, %v113
    %v115 = vld [vmem:[#allocation2] sm:$0xff]
    %v116 = vmul.f32 %v115, %v115
    %v117 = vsel %vm83, %v116, 0.0
    %118 = vadd.xlane.f32.xlu0 %v117
    %v119 = vpop.xlane.xlu0 %118
    %v120 = vrsqrt.pop %v119
    %v121 = vmul.f32 %v120, %v119
    %v122 = vmul.f32 %v121, %v120
    %v123 = vmul.f32 0.5, %v122
    %v124 = vsub.f32 1.5, %v123
    %v125 = vmul.f32 %v120, %v124
    %v126 = vmul.f32 %v119, %v125
    %vm127 = vcmp.eq.f32.partialorder %v119, inf
    %v128 = vsel %vm127, %v119, %v126
    %vm129 = vcmp.eq.f32.partialorder %v119, 0.0
    %v130 = vand.u32 %v119, 2147483648
    %v131 = vsel %vm129, %v130, %v128
    %v132 = vmax.f32 %v131, 1e-12
    %v133 = vrcp.pop %v132
    %v134 = vmul.f32 %v132, %v133
    %v135 = vsub.f32 1.0, %v134
    %v136 = vmul.f32 %v133, %v135
    %v137 = vadd.f32 %v133, %v136
    %vm138 = vweird.f32 %v132
    %vm139 = vweird.f32 %v133
    %vm140 = vmor %vm138, %vm139
    %v141 = vsel %vm140, %v133, %v137
    %v142 = vand.u32 2147483647, %v132
    %vm143 = vcmp.eq.f32.partialorder %v142, 8.507059e+37
    %v144 = vand.u32 %v132, 2147483648
    %v145 = vor.u32 1.1754944e-38, %v144
    %v146 = vsel %vm143, %v145, %v141
    %v147 = vmul.f32 %v115, %v146
    %v148 = vmul.f32 %v114, 2.0
    %v149 = vmul.f32 %v147, 2.0
    %v151 = vsel %vm83, %v148, 0
    %v154 = vsel %vm83, %v147, 0
    %156 = vmatpush.xpose.msra.mxu0 0.0
    %157 = vmatpush.xpose.msra.mxu0 0.0
    %158 = vmatpush.xpose.msra.mxu0 0.0
    %159 = vmatpush.xpose.msra.mxu0 0.0
    %160 = vmatpush.xpose.msra.mxu0 0.0
    %161 = vmatpush.xpose.msra.mxu0 0.0
    %162 = vmatpush.xpose.msra.mxu0 0.0
    %163 = vmatpush.xpose.msra.mxu0 0.0
    %164 = vmatpush.xpose.msra.mxu0 0.0
    %165 = vmatpush.xpose.msra.mxu0 0.0
    %166 = vmatpush.xpose.msra.mxu0 0.0
    %167 = vmatpush.xpose.msra.mxu0 0.0
    %168 = vmatpush.xpose.msra.mxu0 0.0
    %169 = vmatpush.xpose.msra.mxu0 0.0
    %170 = vmatpush.xpose.msra.mxu0 0.0
    %171 = vmatpush.xpose.msra.mxu0 %v154
    %172 = vmatmul.f32.gmra.mxu0 %v151
    %v173 = vpop.f32.mrf.mxu0
    %v174 = vadd.f32 0.0, %v173
    %175 = vdwg.mxu0
    %v176 = vlaneseq
    %v177 = vshrl.u32 %v176, 7
    %v178 = vlaneseq
    %v179 = vand.u32 %v178, 127
    %vm180 = vcmp.eq.s32.totalorder %v177, %v179
    %v181 = vsub.f32 %v174, 0.2
    %v182 = vsel %vm180, %v181, %v174
    %v183 = vsel %vm41, %v182, -inf
    %184 = vmax.xlane.f32.xlu0 %v183
    %v185 = vpop.xlane.xlu0 %184
    %v186 = vrot.slane %v185, 4
    %v187 = vmax.f32 %v185, %v186
    %v188 = vrot.slane %v187, 2
    %v189 = vmax.f32 %v187, %v188
    %v190 = vrot.slane %v189, 1
    %v191 = vmax.f32 %v189, %v190
    %v192 = vsub.f32 %v182, %v191
    %v193 = vmul.f32 %v192, 1.442695
    %v194 = vpow.pop %v193
    %v195 = vmul.f32 %v182, %v40
    %v196 = vsel %vm41, %v194, 0.0
    %197 = vadd.xlane.f32.xlu0 %v196
    %v198 = vpop.xlane.xlu0 %197
    %v199 = vlog2.pop %v198
    %v200 = vmul.f32 %v199, 0.6931472
    %v201 = vadd.f32 %v191, %v200
    %v202 = vsel %vm41, %v195, 0.0
    %203 = vadd.xlane.f32.xlu0 %v202
    %v204 = vpop.xlane.xlu0 %203
    %v205 = vmul.f32 %v204, %v65
    %v206 = vsub.f32 %v205, %v201
    %v207 = vrot.slane %v206, 4
    %v208 = vadd.f32 %v206, %v207
    %v209 = vrot.slane %v208, 2
    %v210 = vadd.f32 %v208, %v209
    %v211 = vrot.slane %v210, 1
    %v212 = vadd.f32 %v210, %v211
    %v213 = vmul.f32 %v212, 0.125
    %v214 = vrot.slane %v196, 4
    %v215 = vadd.f32 %v196, %v214
    %v216 = vrot.slane %v215, 2
    %v217 = vadd.f32 %v215, %v216
    %v218 = vrot.slane %v217, 1
    %v219 = vadd.f32 %v217, %v218
    %v220 = vlog2.pop %v219
    %v221 = vmul.f32 %v220, 0.6931472
    %v222 = vadd.f32 %v191, %v221
    %v223 = vrot.slane %v202, 4
    %v224 = vadd.f32 %v202, %v223
    %v225 = vrot.slane %v224, 2
    %v226 = vadd.f32 %v224, %v225
    %v227 = vrot.slane %v226, 1
    %v228 = vadd.f32 %v226, %v227
    %v229 = vmul.f32 %v228, %v80
    %v230 = vsub.f32 %v229, %v222
    %v231 = vsel %vm41, %v230, 0.0
    %232 = vadd.xlane.f32.xlu0 %v231
    %v233 = vpop.xlane.xlu0 %232
    %v234 = vmul.f32 %v233, 0.125
    %v235 = vadd.f32 %v213, %v234
    %v236 = vsub.f32 0.0, %v235
    %v237 = vmul.f32 %v236, 0.5
    %v239 = vsel %vm83, %v149, 0
    %241 = vmatpush.xpose.msra.mxu0 0.0
    %242 = vmatpush.xpose.msra.mxu0 0.0
    %243 = vmatpush.xpose.msra.mxu0 0.0
    %244 = vmatpush.xpose.msra.mxu0 0.0
    %245 = vmatpush.xpose.msra.mxu0 0.0
    %246 = vmatpush.xpose.msra.mxu0 0.0
    %247 = vmatpush.xpose.msra.mxu0 0.0
    %248 = vmatpush.xpose.msra.mxu0 0.0
    %249 = vmatpush.xpose.msra.mxu0 0.0
    %250 = vmatpush.xpose.msra.mxu0 0.0
    %251 = vmatpush.xpose.msra.mxu0 0.0
    %252 = vmatpush.xpose.msra.mxu0 0.0
    %253 = vmatpush.xpose.msra.mxu0 0.0
    %254 = vmatpush.xpose.msra.mxu0 0.0
    %255 = vmatpush.xpose.msra.mxu0 0.0
    %256 = vmatpush.xpose.msra.mxu0 %v154
    %257 = vmatmul.f32.gmra.mxu0 %v239
    %v258 = vpop.f32.mrf.mxu0
    %v259 = vadd.f32 0.0, %v258
    %260 = vdwg.mxu0
    %v261 = vsub.f32 %v259, 0.2
    %v262 = vsel %vm180, %v261, %v259
    %v263 = vsel %vm41, %v262, -inf
    %264 = vmax.xlane.f32.xlu0 %v263
    %v265 = vpop.xlane.xlu0 %264
    %v266 = vrot.slane %v265, 4
    %v267 = vmax.f32 %v265, %v266
    %v268 = vrot.slane %v267, 2
    %v269 = vmax.f32 %v267, %v268
    %v270 = vrot.slane %v269, 1
    %v271 = vmax.f32 %v269, %v270
    %v272 = vsub.f32 %v262, %v271
    %v273 = vmul.f32 %v272, 1.442695
    %v274 = vpow.pop %v273
    %v275 = vmul.f32 %v262, %v40
    %v276 = vsel %vm41, %v274, 0.0
    %277 = vadd.xlane.f32.xlu0 %v276
    %v278 = vpop.xlane.xlu0 %277
    %v279 = vlog2.pop %v278
    %v280 = vmul.f32 %v279, 0.6931472
    %v281 = vadd.f32 %v271, %v280
    %v282 = vsel %vm41, %v275, 0.0
    %283 = vadd.xlane.f32.xlu0 %v282
    %v284 = vpop.xlane.xlu0 %283
    %v285 = vmul.f32 %v284, %v65
    %v286 = vsub.f32 %v285, %v281
    %v287 = vrot.slane %v286, 4
    %v288 = vadd.f32 %v286, %v287
    %v289 = vrot.slane %v288, 2
    %v290 = vadd.f32 %v288, %v289
    %v291 = vrot.slane %v290, 1
    %v292 = vadd.f32 %v290, %v291
    %v293 = vmul.f32 %v292, 0.125
    %v294 = vsub.f32 0.0, %v293
    %v295 = vadd.f32 %v237, %v294
    %v297 = vsel %vm83, %v114, 0
    %299 = vmatpush.xpose.msra.mxu0 0.0
    %300 = vmatpush.xpose.msra.mxu0 0.0
    %301 = vmatpush.xpose.msra.mxu0 0.0
    %302 = vmatpush.xpose.msra.mxu0 0.0
    %303 = vmatpush.xpose.msra.mxu0 0.0
    %304 = vmatpush.xpose.msra.mxu0 0.0
    %305 = vmatpush.xpose.msra.mxu0 0.0
    %306 = vmatpush.xpose.msra.mxu0 0.0
    %307 = vmatpush.xpose.msra.mxu0 0.0
    %308 = vmatpush.xpose.msra.mxu0 0.0
    %309 = vmatpush.xpose.msra.mxu0 0.0
    %310 = vmatpush.xpose.msra.mxu0 0.0
    %311 = vmatpush.xpose.msra.mxu0 0.0
    %312 = vmatpush.xpose.msra.mxu0 0.0
    %313 = vmatpush.xpose.msra.mxu0 0.0
    %314 = vmatpush.xpose.msra.mxu0 %v297
    %315 = vmatmul.f32.gmra.mxu0 %v151
    %v316 = vpop.f32.mrf.mxu0
    %v317 = vadd.f32 0.0, %v316
    %318 = vdwg.mxu0
    %v319 = vsub.f32 %v317, 0.2
    %v320 = vsel %vm180, %v319, %v317
    %v321 = vsel %vm41, %v320, -inf
    %322 = vmax.xlane.f32.xlu0 %v321
    %v323 = vpop.xlane.xlu0 %322
    %v324 = vrot.slane %v323, 4
    %v325 = vmax.f32 %v323, %v324
    %v326 = vrot.slane %v325, 2
    %v327 = vmax.f32 %v325, %v326
    %v328 = vrot.slane %v327, 1
    %v329 = vmax.f32 %v327, %v328
    %v330 = vsub.f32 %v320, %v329
    %v331 = vmul.f32 %v330, 1.442695
    %v332 = vpow.pop %v331
    %v333 = vmul.f32 %v320, %v40
    %v334 = vsel %vm41, %v332, 0.0
    %335 = vadd.xlane.f32.xlu0 %v334
    %v336 = vpop.xlane.xlu0 %335
    %v337 = vlog2.pop %v336
    %v338 = vmul.f32 %v337, 0.6931472
    %v339 = vadd.f32 %v329, %v338
    %v340 = vsel %vm41, %v333, 0.0
    %341 = vadd.xlane.f32.xlu0 %v340
    %v342 = vpop.xlane.xlu0 %341
    %v343 = vmul.f32 %v342, %v65
    %v344 = vsub.f32 %v343, %v339
    %v345 = vrot.slane %v344, 4
    %v346 = vadd.f32 %v344, %v345
    %v347 = vrot.slane %v346, 2
    %v348 = vadd.f32 %v346, %v347
    %v349 = vrot.slane %v348, 1
    %v350 = vadd.f32 %v348, %v349
    %v351 = vmul.f32 %v350, 0.125
    %v352 = vsub.f32 0.0, %v351
    %v353 = vadd.f32 %v295, %v352
    %vm354 = vcmask 0
    %355 = vst.msk [vmem:[#allocation5] sm:$0x1] %vm354, %v353
    // Predicated region
    $region22: #{tpu_custom_call.1} parent=1 // pred_check
      _
    $region23: #{tpu_custom_call.1} parent=1 // pred_check_branch
      %357 = sbr.rel (0) target = $region25
    $region24: #{tpu_custom_call.1} parent=1 // pred_region
      %359 = vsyncadd [#allocation4], 0
      %s361 = sshll.u32 [#allocation5], 4
      %s362 = int_to_ptr.vmem [resolvable:$true] %s361
      %s363 = sshll.u32 %s4, 4
      %s364 = int_to_ptr.hbm [resolvable:$true] %s363
      %366 = dma.vmem_to_hbm [thread:$0]  %s362, 16, %s364, [#allocation4]
    $region25: #{tpu_custom_call.1} parent=1 // pred_fallthru
      _
    // Predicated region
    $region26: #{tpu_custom_call.1} parent=1 // pred_check
      _
    $region27: #{tpu_custom_call.1} parent=1 // pred_check_branch
      %368 = sbr.rel (0) target = $region29
    $region28: #{tpu_custom_call.1} parent=1 // pred_region
      %370 = dma.done [#allocation4], 16
    $region29: #{tpu_custom_call.1} parent=1 // pred_fallthru
      _
    %371 = vsyncpa [#allocation3], 1
    %372 = vsyncpa [#allocation4], 1

</llo_original>
